<compile_context>
chip_gen: v7x
topology: tpu7x:2x2x1
jax: 0.10.0
libtpu: 0.0.40
codegen_flags: <defaults>
</compile_context>

<pallas_src>
import jax
import jax.numpy as jnp
from jax.experimental import pallas as pl
from jax.experimental.pallas import tpu as pltpu

NUM_CLASSES = 5
C_PAD_LOGITS = 128     # lane-dense class dim for the logits-output path
C_PAD_LOSS = 16        # sublane-packed class dim for the fused-loss path (never stored to HBM)
_NEG_BIG = -1e30       # Python float, NOT jnp.float32(...) (would become a captured jax.Array)


def _round_up(x, m):
    return (x + m - 1) // m * m


def _vmem_cap_bytes():
    """Generation-aware VMEM budget (leave ~20% headroom for Mosaic internal scratch)."""
    try:
        cap = int(pltpu.get_tpu_info().vmem_capacity_bytes)
    except Exception:
        cap = 64 << 20   # conservative (v7x-sized) fallback, e.g. interpret mode / no TPU visible
    return (cap * 4) // 5


def _pick_tile_b(B, D, in_itemsize, c_rows, vmem_cap, x_tile_bytes):
    """Byte-targeted batch tile; shrink TB (not the VMEM limit) until the footprint fits."""
    tb = x_tile_bytes // max(1, in_itemsize * D)
    tb = max(16, min(4096, tb))
    tb = min(_round_up(tb, 16), _round_up(B, 16))

    def footprint(t):
        return (2 * t * D * in_itemsize          # x tile (double-buffered)
                + c_rows * D * in_itemsize       # weight (single-buffered, Buffered(1))
                + 2 * C_PAD_LOGITS * 4           # bias
                + 2 * t * C_PAD_LOGITS * 4       # logits output tile (worst case)
                + 2 * t * 4                      # labels
                + t * 4                          # per-row accumulator scratch
                + (2 << 20))                     # slack for semaphores / internal scratch

    while tb > 16 and footprint(tb) > vmem_cap:
        tb = max(16, _round_up(tb // 2, 16))
    return tb, footprint(tb)


# ---------------------------------------------------------------------------
# Kernels
# ---------------------------------------------------------------------------
def _logits_kernel(x_ref, w_ref, b_ref, o_ref):
    # logits = x @ W^T + b ; W kept in (C_pad, D) layout, transpose folded into the MXU op.
    acc = jax.lax.dot_general(
        x_ref[...], w_ref[...],
        dimension_numbers=(((1,), (1,)), ((), ())),
        preferred_element_type=jnp.float32)
    o_ref[...] = (acc + b_ref[...]).astype(o_ref.dtype)


def _make_ce_loss_kernel(num_classes, true_batch, tile_b, inner_blocks):
    """Fused linear -> log_softmax -> NLL(mean); grid = (core_split, batch_tiles)."""
    inv_b = 1.0 / float(true_batch)   # Python float -> inlined literal (not a captured constant)

    def kernel(x_ref, w_ref, b_ref, y_ref, o_ref, row_acc):
        c = pl.program_id(0)          # core-split axis ("parallel")
        k = pl.program_id(1)          # batch-tile axis ("arbitrary", reduction)

        @pl.when(k == 0)
        def _():
            row_acc[...] = jnp.zeros_like(row_acc)

        logits = jax.lax.dot_general(
            x_ref[...], w_ref[...],
            dimension_numbers=(((1,), (1,)), ((), ())),
            preferred_element_type=jnp.float32) + b_ref[...]

        # Mask zero-padded class lanes out of max / logsumexp (finite big-negative, no NaNs).
        cls_iota = jax.lax.broadcasted_iota(jnp.int32, logits.shape, 1)
        cls_valid = cls_iota < num_classes
        masked = jnp.where(cls_valid, logits, _NEG_BIG)

        m = jnp.max(masked, axis=-1, keepdims=True)
        lse = m + jnp.log(jnp.sum(jnp.exp(masked - m), axis=-1, keepdims=True))

        # One-hot gather of the target logit: lane compare + in-vreg lane reduce.
        onehot = (cls_iota == y_ref[...]) & cls_valid
        picked = jnp.sum(jnp.where(onehot, logits, 0.0), axis=-1, keepdims=True)

        # Mask padded batch rows (ragged last tile / padded core-split tiles).
        gi = c * inner_blocks + k
        row_iota = jax.lax.broadcasted_iota(jnp.int32, (tile_b, 1), 0)
        row_valid = (gi * tile_b + row_iota) < true_batch

        # Per-row accumulate (pure elementwise); cross-sublane reduce deferred to finalize.
        row_acc[...] += jnp.where(row_valid, lse - picked, 0.0)

        @pl.when(k == pl.num_programs(1) - 1)
        def _():
            partial = jnp.sum(row_acc[...]) * inv_b
            o_ref[...] = jnp.broadcast_to(partial, o_ref.shape)

    return kernel


# ---------------------------------------------------------------------------
# Wrapper
# ---------------------------------------------------------------------------
def cross_entropy_work_forward(x, w, b, y=None, *,
                               compute_dtype=jnp.bfloat16,
                               core_split=2,
                               x_tile_bytes=4 << 20):
    """Pallas equivalent of CrossEntropyWork.forward.

    x: (B, D) float32 ; w: (C, D) float32 (nn.Linear layout) ; b: (C,) float32
    y: optional (B,) int class labels.
    Returns logits (B, C) float32 if y is None, else scalar mean cross-entropy loss.
    """
    B, D = x.shape
    C = w.shape[0]
    in_itemsize = jnp.dtype(compute_dtype).itemsize

    vmem_cap = _vmem_cap_bytes()
    c_rows = C_PAD_LOGITS if y is None else C_PAD_LOSS
    TB, fp = _pick_tile_b(B, D, in_itemsize, c_rows, vmem_cap, x_tile_bytes)
    vmem_bytes = int(min(max(fp, 4 << 20), vmem_cap))

    # Cast once in the wrapper: bf16 halves the dominant x-stream DMA; MXU accumulates in f32.
    xc = x.astype(compute_dtype)
    wc = w.astype(compute_dtype)
    bf = b.astype(jnp.float32)

    if y is None:
        # ------------------------- logits path -------------------------
        B_pad = _round_up(B, TB)
        grid = (B_pad // TB,)
        x_p = xc if B_pad == B else jnp.pad(xc, ((0, B_pad - B), (0, 0)))
        w_p = jnp.pad(wc, ((0, C_PAD_LOGITS - C), (0, 0)))
        b_p = jnp.pad(bf, (0, C_PAD_LOGITS - C)).reshape(1, C_PAD_LOGITS)

        out_dtype = jnp.bfloat16 if compute_dtype == jnp.bfloat16 else jnp.float32
        out = pl.pallas_call(
            _logits_kernel,
            out_shape=jax.ShapeDtypeStruct((B_pad, C_PAD_LOGITS), out_dtype),
            grid=grid,
            in_specs=[
                pl.BlockSpec((TB, D), lambda i: (i, 0)),
                pl.BlockSpec((C_PAD_LOGITS, D), lambda i: (0, 0),
                             pipeline_mode=pl.Buffered(1)),
                pl.BlockSpec((1, C_PAD_LOGITS), lambda i: (0, 0),
                             pipeline_mode=pl.Buffered(1)),
            ],
            out_specs=pl.BlockSpec((TB, C_PAD_LOGITS), lambda i: (i, 0)),
            compiler_params=pltpu.CompilerParams(
                dimension_semantics=("parallel",),
                vmem_limit_bytes=vmem_bytes),
        )(x_p, w_p, b_p)
        return out[:B, :C].astype(jnp.float32)

    # --------------------------- loss path ----------------------------
    ncores = max(1, int(core_split))
    nb = pl.cdiv(B, TB)
    inner_nb = _round_up(nb, ncores) // ncores      # batch tiles per core
    B_pad = ncores * inner_nb * TB

    y_i = y.astype(jnp.int32)
    if B_pad != B:
        x_p = jnp.pad(xc, ((0, B_pad - B), (0, 0)))
        y_i = jnp.pad(y_i, (0, B_pad - B))
    else:
        x_p = xc
    y_p = y_i.reshape(B_pad, 1)

    w_p = jnp.pad(wc, ((0, C_PAD_LOSS - C), (0, 0)))          # (16, D)
    b_p = jnp.pad(bf, (0, C_PAD_LOSS - C)).reshape(1, C_PAD_LOSS)

    grid = (ncores, inner_nb)
    out = pl.pallas_call(
        _make_ce_loss_kernel(C, B, TB, inner_nb),
        out_shape=jax.ShapeDtypeStruct((1, ncores * 128), jnp.float32),
        grid=grid,
        in_specs=[
            pl.BlockSpec((TB, D), lambda c, k: (c * inner_nb + k, 0)),
            pl.BlockSpec((C_PAD_LOSS, D), lambda c, k: (0, 0),
                         pipeline_mode=pl.Buffered(1)),
            pl.BlockSpec((1, C_PAD_LOSS), lambda c, k: (0, 0),
                         pipeline_mode=pl.Buffered(1)),
            pl.BlockSpec((TB, 1), lambda c, k: (c * inner_nb + k, 0)),
        ],
        out_specs=pl.BlockSpec((1, 128), lambda c, k: (0, c)),
        scratch_shapes=[pltpu.VMEM((TB, 1), jnp.float32)],
        compiler_params=pltpu.CompilerParams(
            dimension_semantics=("parallel", "arbitrary"),
            vmem_limit_bytes=vmem_bytes),
    )(x_p, w_p, b_p, y_p)

    # Each core block holds its (already 1/B-scaled) partial broadcast over 128 lanes.
    partials = out.reshape(ncores, 128)[:, 0]
    return jnp.sum(partials)


# ---------------------------------------------------------------------------
# Demo / self-check
# ---------------------------------------------------------------------------
if __name__ == "__main__":
    key = jax.random.PRNGKey(0)
    k_x, k_w, k_b, k_y, k_x2, k_y2 = jax.random.split(key, 6)

    B, D = 8, 32
    x = jax.random.normal(k_x, (B, D), dtype=jnp.float32)
    w = jax.random.normal(k_w, (NUM_CLASSES, D), dtype=jnp.float32) * 0.1
    b = jax.random.normal(k_b, (NUM_CLASSES,), dtype=jnp.float32) * 0.1
    y = jax.random.randint(k_y, (B,), 0, NUM_CLASSES, dtype=jnp.int32)

    def ref_fwd(xr, yr=None):
        lg = xr @ w.T + b
        if yr is None:
            return lg
        lse = jax.nn.logsumexp(lg, axis=-1)
        return jnp.mean(lse - lg[jnp.arange(xr.shape[0]), yr])

    # Tolerances account for TPU MXU matmul strategies (bf16 passes) on both sides:
    # f32 path is tight-ish, default bf16-input path is looser.
    F32_TOL = dict(atol=1e-2, rtol=1e-2)
    BF16_TOL = dict(atol=3e-2, rtol=3e-2)

    # f32 compute path
    logits_f32 = jax.block_until_ready(
        cross_entropy_work_forward(x, w, b, compute_dtype=jnp.float32))
    loss_f32 = jax.block_until_ready(
        cross_entropy_work_forward(x, w, b, y, compute_dtype=jnp.float32))
    assert jnp.allclose(logits_f32, ref_fwd(x), **F32_TOL)
    assert jnp.allclose(loss_f32, ref_fwd(x, y), **F32_TOL)

    # default bf16-input path (f32 accumulation)
    logits_bf = jax.block_until_ready(cross_entropy_work_forward(x, w, b))
    loss_bf = jax.block_until_ready(cross_entropy_work_forward(x, w, b, y))
    assert jnp.allclose(logits_bf, ref_fwd(x), **BF16_TOL)
    assert jnp.allclose(loss_bf, ref_fwd(x, y), **BF16_TOL)

    # Ragged batch + multi-tile gridded reduction + 2-way core split (B2 % TB != 0).
    B2 = 100
    x2 = jax.random.normal(k_x2, (B2, D), dtype=jnp.float32)
    y2 = jax.random.randint(k_y2, (B2,), 0, NUM_CLASSES, dtype=jnp.int32)
    small = 16 * D * 4   # byte target that forces TB=16 -> several batch tiles per core
    logits2 = jax.block_until_ready(
        cross_entropy_work_forward(x2, w, b, compute_dtype=jnp.float32, x_tile_bytes=small))
    loss2 = jax.block_until_ready(
        cross_entropy_work_forward(x2, w, b, y2, compute_dtype=jnp.float32, x_tile_bytes=small))
    assert jnp.allclose(logits2, ref_fwd(x2), **F32_TOL)
    assert jnp.allclose(loss2, ref_fwd(x2, y2), **F32_TOL)

    print("KERNEL_OK")
</pallas_src>

<mosaic_0001>
module attributes {stable_mosaic.version = 11 : i64} {
  func.func @_logits_kernel(%arg0: i32, %arg1: memref<16x32xf32, #tpu.memory_space<vmem>>, %arg2: memref<128x32xf32, #tpu.memory_space<vmem>>, %arg3: memref<1x128xf32, #tpu.memory_space<vmem>>, %arg4: memref<16x128xf32, #tpu.memory_space<vmem>>) attributes {dimension_semantics = [#tpu.dimension_semantics<parallel>], iteration_bounds = array<i64: 1>, scalar_prefetch = 0 : i64, scratch_operands = 0 : i64, tpu.core_type = #tpu.core_type<tc>, window_params = [{transform_indices = @transform_0, window_bounds = array<i64: 16, 32>}, {pipeline_mode = #tpu.pipeline_mode<synchronous>, transform_indices = @transform_1, window_bounds = array<i64: 128, 32>}, {pipeline_mode = #tpu.pipeline_mode<synchronous>, transform_indices = @transform_2, window_bounds = array<i64: 1, 128>}, {transform_indices = @transform_3, window_bounds = array<i64: 16, 128>}]} {
    %c0 = arith.constant 0 : index
    %c0_0 = arith.constant 0 : index
    %0 = vector.load %arg1[%c0, %c0_0] : memref<16x32xf32, #tpu.memory_space<vmem>>, vector<16x32xf32>
    %c0_1 = arith.constant 0 : index
    %c0_2 = arith.constant 0 : index
    %1 = vector.load %arg2[%c0_1, %c0_2] : memref<128x32xf32, #tpu.memory_space<vmem>>, vector<128x32xf32>
    %cst = arith.constant dense<0.000000e+00> : vector<16x128xf32>
    %2 = tpu.matmul %0, %1, %cst {dimension_numbers = #tpu.dot_dimension_numbers<[1], [1], [0], [0], [0, 0, 1, 0], [], []>} : vector<16x32xf32>, vector<128x32xf32>, vector<16x128xf32> -> vector<16x128xf32>
    %c0_3 = arith.constant 0 : index
    %c0_4 = arith.constant 0 : index
    %3 = vector.load %arg3[%c0_3, %c0_4] : memref<1x128xf32, #tpu.memory_space<vmem>>, vector<1x128xf32>
    %4 = vector.broadcast %3 : vector<1x128xf32> to vector<16x128xf32>
    %5 = arith.addf %2, %4 : vector<16x128xf32>
    %c0_5 = arith.constant 0 : index
    %c0_6 = arith.constant 0 : index
    %6 = vector.load %arg4[%c0_5, %c0_6] : memref<16x128xf32, #tpu.memory_space<vmem>>, vector<16x128xf32>
    tpu.vector_store %arg4[%c0_5, %c0_6], %5 {strides = array<i32>} : memref<16x128xf32, #tpu.memory_space<vmem>>, vector<16x128xf32>,
    return
  }
  func.func @transform_0(%arg0: i32) -> (i32, i32) {
    %c0_i32 = arith.constant 0 : i32
    %c0_i32_0 = arith.constant 0 : i32
    return %arg0, %c0_i32 : i32, i32
  }
  func.func @transform_1(%arg0: i32) -> (i32, i32) {
    %c0_i32 = arith.constant 0 : i32
    %c0_i32_0 = arith.constant 0 : i32
    %c0_i32_1 = arith.constant 0 : i32
    return %c0_i32, %c0_i32_0 : i32, i32
  }
  func.func @transform_2(%arg0: i32) -> (i32, i32) {
    %c0_i32 = arith.constant 0 : i32
    %c0_i32_0 = arith.constant 0 : i32
    %c0_i32_1 = arith.constant 0 : i32
    return %c0_i32, %c0_i32_0 : i32, i32
  }
  func.func @transform_3(%arg0: i32) -> (i32, i32) {
    %c0_i32 = arith.constant 0 : i32
    %c0_i32_0 = arith.constant 0 : i32
    return %arg0, %c0_i32 : i32, i32
  }
}

</mosaic_0001>

<llo_original>
// kernel: tpu_custom_call.1
$region0: #{tpu_custom_call.1}
  #allocation0 [shape = 'u32[]', space=smem, size = 0x4, offset = 0x4, fixed_abs, tag = 'smem constant byte address 0x4 - core index']
  #allocation1 [shape = 'u32[144,128]{1,0:T(1,128)}', space=vmem, size = 0x12000, scoped, tag = 'internal scratch']
  %s0 = inlined_call_operand.vmem [shape: f32[16,32], index: 0, kind: input, shape index: {}]
  %s1 = inlined_call_operand.vmem [shape: f32[128,32], index: 1, kind: input, shape index: {}]
  %s2 = inlined_call_operand.vmem [shape: f32[1,128], index: 2, kind: input, shape index: {}]
  %s3 = inlined_call_operand.hbm [shape: f32[16,128], index: 3, kind: output, shape index: {}]
  %s4 = sld [smem:[#allocation0]]
  $region22: #{tpu_custom_call.1} parent=0
    _
  %s6 = ssub.s32 1, %s4
  %s7 = scalar_select 0, %s6, %s4
  $region1: #{tpu_custom_call.1} parent=0
    #allocation2 [shape = 'u8[8192]{0}', space=vmem, size = 0x2000, scoped, tag = 'output window, operand 0, single buffered']
    #allocation3 [shape = 's32[1]{0}', space=sflag, size = 0x4, scoped, tag = 'scoped memory for tpu_custom_call.1']
    %8 = vsyncpa [#allocation3], 0
    // Predicated region
    $region2: #{tpu_custom_call.1} parent=1 // pred_check
      _
    $region3: #{tpu_custom_call.1} parent=1 // pred_check_branch
      %10 = sbr.rel (0) target = $region5
    $region4: #{tpu_custom_call.1} parent=1 // pred_region
      _
    $region5: #{tpu_custom_call.1} parent=1 // pred_fallthru
      _
    // Predicated region
    $region6: #{tpu_custom_call.1} parent=1 // pred_check
      _
    $region7: #{tpu_custom_call.1} parent=1 // pred_check_branch
      %12 = sbr.rel (0) target = $region9
    $region8: #{tpu_custom_call.1} parent=1 // pred_region
      _
    $region9: #{tpu_custom_call.1} parent=1 // pred_fallthru
      _
    // Predicated region
    $region10: #{tpu_custom_call.1} parent=1 // pred_check
      _
    $region11: #{tpu_custom_call.1} parent=1 // pred_check_branch
      %14 = sbr.rel (0) target = $region13
    $region12: #{tpu_custom_call.1} parent=1 // pred_region
      _
    $region13: #{tpu_custom_call.1} parent=1 // pred_fallthru
      _
    %v15 = vld [vmem:[%s0] sm:$0xff]
    %v16 = vld [vmem:[%s0 + $0x8] sm:$0xff]
    %v17 = vld [vmem:[%s1] sm:$0xff]
    %v18 = vld [vmem:[%s1 + $0x8] sm:$0xff]
    %v19 = vld [vmem:[%s1 + $0x10] sm:$0xff]
    %v20 = vld [vmem:[%s1 + $0x18] sm:$0xff]
    %v21 = vld [vmem:[%s1 + $0x20] sm:$0xff]
    %v22 = vld [vmem:[%s1 + $0x28] sm:$0xff]
    %v23 = vld [vmem:[%s1 + $0x30] sm:$0xff]
    %v24 = vld [vmem:[%s1 + $0x38] sm:$0xff]
    %v25 = vld [vmem:[%s1 + $0x40] sm:$0xff]
    %v26 = vld [vmem:[%s1 + $0x48] sm:$0xff]
    %v27 = vld [vmem:[%s1 + $0x50] sm:$0xff]
    %v28 = vld [vmem:[%s1 + $0x58] sm:$0xff]
    %v29 = vld [vmem:[%s1 + $0x60] sm:$0xff]
    %v30 = vld [vmem:[%s1 + $0x68] sm:$0xff]
    %v31 = vld [vmem:[%s1 + $0x70] sm:$0xff]
    %v32 = vld [vmem:[%s1 + $0x78] sm:$0xff]
    %v33 = vld [vmem:[%s2] sm:$0x1]
    %v35 = vlaneseq
    %v36 = vshrl.u32 %v35, 7
    %v37 = vsub.s32 0, %v36
    %v38 = vrot.slane %v33, %v37
    %vm40 = vcmask 261120
    %v42 = vsel %vm40, %v15, 0
    %v45 = vsel %vm40, %v16, 0
    %v48 = vsel %vm40, %v17, 0
    %v51 = vsel %vm40, %v18, 0
    %v54 = vsel %vm40, %v19, 0
    %v57 = vsel %vm40, %v20, 0
    %v60 = vsel %vm40, %v21, 0
    %v63 = vsel %vm40, %v22, 0
    %v66 = vsel %vm40, %v23, 0
    %v69 = vsel %vm40, %v24, 0
    %v72 = vsel %vm40, %v25, 0
    %v75 = vsel %vm40, %v26, 0
    %v78 = vsel %vm40, %v27, 0
    %v81 = vsel %vm40, %v28, 0
    %v84 = vsel %vm40, %v29, 0
    %v87 = vsel %vm40, %v30, 0
    %v90 = vsel %vm40, %v31, 0
    %v93 = vsel %vm40, %v32, 0
    %95 = vmatprep.subr.mxu0 0.0
    %96 = vmatpush1.xpose.msra.mxu0 %v48
    %97 = vmatprep.subr.mxu0 0.0
    %98 = vmatpush1.xpose.msra.mxu0 %v51
    %99 = vmatprep.subr.mxu0 0.0
    %100 = vmatpush1.xpose.msra.mxu0 %v54
    %101 = vmatprep.subr.mxu0 0.0
    %102 = vmatpush1.xpose.msra.mxu0 %v57
    %103 = vmatprep.subr.mxu0 0.0
    %104 = vmatpush1.xpose.msra.mxu0 %v60
    %105 = vmatprep.subr.mxu0 0.0
    %106 = vmatpush1.xpose.msra.mxu0 %v63
    %107 = vmatprep.subr.mxu0 0.0
    %108 = vmatpush1.xpose.msra.mxu0 %v66
    %109 = vmatprep.subr.mxu0 0.0
    %110 = vmatpush1.xpose.msra.mxu0 %v69
    %111 = vmatprep.subr.mxu0 0.0
    %112 = vmatpush1.xpose.msra.mxu0 %v72
    %113 = vmatprep.subr.mxu0 0.0
    %114 = vmatpush1.xpose.msra.mxu0 %v75
    %115 = vmatprep.subr.mxu0 0.0
    %116 = vmatpush1.xpose.msra.mxu0 %v78
    %117 = vmatprep.subr.mxu0 0.0
    %118 = vmatpush1.xpose.msra.mxu0 %v81
    %119 = vmatprep.subr.mxu0 0.0
    %120 = vmatpush1.xpose.msra.mxu0 %v84
    %121 = vmatprep.subr.mxu0 0.0
    %122 = vmatpush1.xpose.msra.mxu0 %v87
    %123 = vmatprep.subr.mxu0 0.0
    %124 = vmatpush1.xpose.msra.mxu0 %v90
    %125 = vmatprep.subr.mxu0 0.0
    %126 = vmatpush1.xpose.msra.mxu0 %v93
    %127 = vmatprep.subr.mxu0 0.0
    %128 = vmatpush1.xpose.msra.mxu0 0.0
    %129 = vmatprep.subr.mxu0 0.0
    %130 = vmatpush1.xpose.msra.mxu0 0.0
    %131 = vmatprep.subr.mxu0 0.0
    %132 = vmatpush1.xpose.msra.mxu0 0.0
    %133 = vmatprep.subr.mxu0 0.0
    %134 = vmatpush1.xpose.msra.mxu0 0.0
    %135 = vmatprep.subr.mxu0 0.0
    %136 = vmatpush1.xpose.msra.mxu0 0.0
    %137 = vmatprep.subr.mxu0 0.0
    %138 = vmatpush1.xpose.msra.mxu0 0.0
    %139 = vmatprep.subr.mxu0 0.0
    %140 = vmatpush1.xpose.msra.mxu0 0.0
    %141 = vmatprep.subr.mxu0 0.0
    %142 = vmatpush1.xpose.msra.mxu0 0.0
    %143 = vmatprep.subr.mxu0 0.0
    %144 = vmatpush1.xpose.msra.mxu0 0.0
    %145 = vmatprep.subr.mxu0 0.0
    %146 = vmatpush1.xpose.msra.mxu0 0.0
    %147 = vmatprep.subr.mxu0 0.0
    %148 = vmatpush1.xpose.msra.mxu0 0.0
    %149 = vmatprep.subr.mxu0 0.0
    %150 = vmatpush1.xpose.msra.mxu0 0.0
    %151 = vmatprep.subr.mxu0 0.0
    %152 = vmatpush1.xpose.msra.mxu0 0.0
    %153 = vmatprep.subr.mxu0 0.0
    %154 = vmatpush1.xpose.msra.mxu0 0.0
    %155 = vmatprep.subr.mxu0 0.0
    %156 = vmatpush1.xpose.msra.mxu0 0.0
    %157 = vmatprep.subr.mxu0 0.0
    %158 = vmatpush1.xpose.msra.mxu0 0.0
    %159 = vmatprep.mubr.f32.mxu0 0.0
    %160 = vmatmul.mubr.f32.gmra.mrb[0].mxu0 %v42
    %v161 = vpop.f32.mrb[0].mxu0
    %v162 = vadd.f32 %v38, %v161
    %v163 = vpop.f32.mrb[0].mxu0
    %164 = vmatprep.mubr.f32.mxu0 0.0
    %165 = vmatmul.mubr.f32.gmra.mrb[0].mxu0 %v45
    %v166 = vpop.f32.mrb[0].mxu0
    %v167 = vadd.f32 %v38, %v166
    %v168 = vpop.f32.mrb[0].mxu0
    %169 = vdwg.mxu0
    %170 = vst [vmem:[#allocation2] sm:$0xff] %v162
    %171 = vst [vmem:[#allocation2 + $0x8] sm:$0xff] %v167
    // Predicated region
    $region14: #{tpu_custom_call.1} parent=1 // pred_check
      _
    $region15: #{tpu_custom_call.1} parent=1 // pred_check_branch
      %173 = sbr.rel (0) target = $region17
    $region16: #{tpu_custom_call.1} parent=1 // pred_region
      %s175 = ssub.s32 256, 256
      %176 = vsyncadd [#allocation3], %s175
      %s177 = sshll.u32 [#allocation2], 4
      %s178 = int_to_ptr.vmem [resolvable:$true] %s177
      %183 = dma.vmem_to_hbm [thread:$0]  %s178, 256, %s3, [#allocation3], 128, 128, 8
    $region17: #{tpu_custom_call.1} parent=1 // pred_fallthru
      _
    // Predicated region
    $region18: #{tpu_custom_call.1} parent=1 // pred_check
      _
    $region19: #{tpu_custom_call.1} parent=1 // pred_check_branch
      %185 = sbr.rel (0) target = $region21
    $region20: #{tpu_custom_call.1} parent=1 // pred_region
      %186 = dma.done [#allocation3], 256
    $region21: #{tpu_custom_call.1} parent=1 // pred_fallthru
      _
    %187 = vsyncpa [#allocation3], 1

</llo_original>
